<compile_context>
chip_gen: v5e
topology: v5e:2x2
jax: 0.10.0
libtpu: 0.0.40
codegen_flags: <defaults>
</compile_context>

<pallas_src>
import numpy as np
import jax
import jax.numpy as jnp
from jax import lax
from jax.experimental import pallas as pl
from jax.experimental.pallas import tpu as pltpu


# ----------------------------------------------------------------------------
# Kernel: one activation slab per grid step.
#   w_ref: SMEM (C,)   folded per-channel weights (f32)
#   b_ref: SMEM (1,)   folded bias (f32)
#   x_ref: VMEM (1, C, S, 128)  (or (1, C, T, V) on the fallback path), native dtype
#   o_ref: VMEM (1, S, 128)     (or (1, T, V)),                       f32
# ----------------------------------------------------------------------------
def _fc_kernel(w_ref, b_ref, x_ref, o_ref):
    C = x_ref.shape[1]
    acc = x_ref[0, 0] * w_ref[0]          # promotes to f32 (w is f32)
    if C <= 4:
        # short static unroll (one scalar * slab VPU op per channel)
        for c in range(1, C):
            acc = acc + x_ref[0, c] * w_ref[c]
    else:
        # bounded live ranges for larger channel counts
        acc = lax.fori_loop(1, C, lambda c, a: a + x_ref[0, c] * w_ref[c], acc)
    o_ref[0] = (acc + b_ref[0]).astype(o_ref.dtype)


# ----------------------------------------------------------------------------
# Sublane-tile selection for the lane-dense path.
#   R = N // 128 rows of 128 lanes each.  Target a few MiB of activations per
#   grid step; keep double-buffered footprint under v5e's 16 MiB scoped VMEM.
# ----------------------------------------------------------------------------
def _pick_sublane_tile(R, C, x_itemsize):
    max_step_bytes = 4 << 20                       # per-step DMA budget (~4 MiB)
    bytes_per_row = 128 * (C * x_itemsize + 4)     # input rows + f32 output row
    S = (max_step_bytes // bytes_per_row) // 8 * 8  # multiple of 8 sublanes
    S = max(8, S)
    if S >= R:
        return R                                   # single tile (== full dim: legal)
    return S                                       # multiple of 8: legal; tail masked


# ----------------------------------------------------------------------------
# Wrapper: fold Align + fc into (w_folded, b_folded) and launch the kernel.
# ----------------------------------------------------------------------------
def fully_connected_pallas(x, params, c_in, c_out, *, sublane_tile=None):
    B, C, T, V = x.shape
    assert C == c_in
    f32 = jnp.float32

    fc_w = params["fc_w"][0, :, 0, 0].astype(f32)   # (c_out,)
    fc_b = params["fc_b"].astype(f32)                # (1,)

    if c_in > c_out:
        # Align is a 1x1 conv: fold it into the fc weights (exact algebra).
        aw = params["align_w"][:, :, 0, 0].astype(f32)   # (c_out, c_in)
        ab = params["align_b"].astype(f32)               # (c_out,)
        w_folded = jnp.einsum("o,oi->i", fc_w, aw, precision=lax.Precision.HIGHEST)
        b_folded = jnp.dot(fc_w, ab, precision=lax.Precision.HIGHEST) + fc_b[0]
    elif c_in < c_out:
        # Align zero-pads channels -> padded channels contribute nothing.
        w_folded = fc_w[:c_in]
        b_folded = fc_b[0]
    else:
        w_folded = fc_w
        b_folded = fc_b[0]

    w_folded = w_folded.astype(f32)
    b_folded = jnp.reshape(b_folded, (1,)).astype(f32)

    out_dtype = jnp.result_type(x.dtype, f32)
    smem = pltpu.MemorySpace.SMEM
    N = T * V

    if N % 128 == 0:
        # --- lane-dense path: positions viewed as (R rows) x (128 lanes) ---
        R = N // 128
        x_r = x.reshape(B, C, R, 128)   # trailing-dim reshape: metadata only
        if sublane_tile is None:
            S = _pick_sublane_tile(R, C, x.dtype.itemsize)
        else:
            S = sublane_tile            # caller must pass a multiple of 8 (or >= R)
        S = min(S, R)
        nR = pl.cdiv(R, S)              # boundary tiles are masked by Pallas

        out = pl.pallas_call(
            _fc_kernel,
            out_shape=jax.ShapeDtypeStruct((B, R, 128), out_dtype),
            grid=(B, nR),
            in_specs=[
                pl.BlockSpec(memory_space=smem),                        # w_folded
                pl.BlockSpec(memory_space=smem),                        # b_folded
                pl.BlockSpec((1, C, S, 128), lambda b, r: (b, 0, r, 0)),
            ],
            out_specs=pl.BlockSpec((1, S, 128), lambda b, r: (b, r, 0)),
            compiler_params=pltpu.CompilerParams(
                dimension_semantics=("parallel", "parallel")),
        )(w_folded, b_folded, x_r)
        return out.reshape(B, 1, T, V)

    # --- fallback path (N not a multiple of 128): one full slab per batch ---
    # Block dims equal the array dims, so the layout is always legal; not
    # lane-dense, but only used for odd position counts.
    out = pl.pallas_call(
        _fc_kernel,
        out_shape=jax.ShapeDtypeStruct((B, T, V), out_dtype),
        grid=(B,),
        in_specs=[
            pl.BlockSpec(memory_space=smem),
            pl.BlockSpec(memory_space=smem),
            pl.BlockSpec((1, C, T, V), lambda b: (b, 0, 0, 0)),
        ],
        out_specs=pl.BlockSpec((1, T, V), lambda b: (b, 0, 0)),
        compiler_params=pltpu.CompilerParams(
            dimension_semantics=("parallel",)),
    )(w_folded, b_folded, x)
    return out[:, None, :, :]


# ----------------------------------------------------------------------------
# Pure-JAX reference (mirrors the PyTorch module) for a correctness check.
# ----------------------------------------------------------------------------
def _conv1x1_nchw(x, w, b):
    out = lax.conv_general_dilated(
        x, w, window_strides=(1, 1), padding="VALID",
        dimension_numbers=("NCHW", "OIHW", "NCHW"),
        precision=lax.Precision.HIGHEST)
    return out + b[None, :, None, None]


def fully_connected_reference(x, params, c_in, c_out):
    B, C, T, V = x.shape
    if c_in > c_out:
        xa = _conv1x1_nchw(x, params["align_w"], params["align_b"])
    elif c_in < c_out:
        xa = jnp.concatenate(
            [x, jnp.zeros((B, c_out - c_in, T, V), x.dtype)], axis=1)
    else:
        xa = x
    return _conv1x1_nchw(xa, params["fc_w"], params["fc_b"])


# ----------------------------------------------------------------------------
if __name__ == "__main__":
    key = jax.random.PRNGKey(0)

    # (c_in, c_out, T, V, sublane_tile) -- exercises:
    #   * all three Align branches (conv fold / zero-pad / identity)
    #   * both kernel channel-loop paths (static unroll vs fori_loop)
    #   * lane-dense path, fallback path (N % 128 != 0), and a masked tail tile
    cases = (
        (8, 4, 16, 16, None),   # align conv fold, fori channel loop
        (4, 8, 16, 16, None),   # zero-pad align, static unroll
        (8, 8, 16, 16, None),   # identity align
        (4, 2, 7, 9, None),     # fallback path (N = 63, not lane-aligned)
        (4, 4, 10, 128, 8),     # lane-dense path with a masked boundary tile
    )

    B = 2
    for c_in, c_out, T, V, stile in cases:
        key, *ks = jax.random.split(key, 6)
        params = {
            "align_w": jax.random.normal(ks[0], (c_out, c_in, 1, 1), jnp.float32) * 0.2,
            "align_b": jax.random.normal(ks[1], (c_out,), jnp.float32) * 0.2,
            "fc_w":    jax.random.normal(ks[2], (1, c_out, 1, 1), jnp.float32) * 0.2,
            "fc_b":    jax.random.normal(ks[3], (1,), jnp.float32) * 0.2,
        }
        x = jax.random.normal(ks[4], (B, c_in, T, V), jnp.float32)

        out_kernel = jax.block_until_ready(
            fully_connected_pallas(x, params, c_in, c_out, sublane_tile=stile))
        out_ref = jax.block_until_ready(
            fully_connected_reference(x, params, c_in, c_out))

        assert out_kernel.shape == (B, 1, T, V), out_kernel.shape
        np.testing.assert_allclose(np.asarray(out_kernel), np.asarray(out_ref),
                                   rtol=1e-4, atol=1e-5)

    print("KERNEL_OK")
</pallas_src>

<mosaic_0001>
module attributes {stable_mosaic.version = 11 : i64} {
  func.func @_fc_kernel(%arg0: i32, %arg1: i32, %arg2: memref<8xf32, #tpu.memory_space<smem>>, %arg3: memref<1xf32, #tpu.memory_space<smem>>, %arg4: memref<1x8x2x128xf32, #tpu.memory_space<vmem>>, %arg5: memref<1x2x128xf32, #tpu.memory_space<vmem>>) attributes {dimension_semantics = [#tpu.dimension_semantics<parallel>, #tpu.dimension_semantics<parallel>], iteration_bounds = array<i64: 2, 1>, scalar_prefetch = 0 : i64, scratch_operands = 0 : i64, tpu.core_type = #tpu.core_type<tc>, window_params = [{transform_indices = @transform_0, window_bounds = array<i64: 8>}, {transform_indices = @transform_1, window_bounds = array<i64: 1>}, {transform_indices = @transform_2, window_bounds = array<i64: 1, 8, 2, 128>}, {transform_indices = @transform_3, window_bounds = array<i64: 1, 2, 128>}]} {
    %c0 = arith.constant 0 : index
    %c0_0 = arith.constant 0 : index
    %c0_1 = arith.constant 0 : index
    %c0_2 = arith.constant 0 : index
    %0 = vector.load %arg4[%c0, %c0_0, %c0_1, %c0_2] : memref<1x8x2x128xf32, #tpu.memory_space<vmem>>, vector<1x1x2x128xf32>
    %1 = vector.shape_cast %0 : vector<1x1x2x128xf32> to vector<2x128xf32>
    %c0_3 = arith.constant 0 : index
    %2 = memref.load %arg2[%c0_3] : memref<8xf32, #tpu.memory_space<smem>>
    %3 = vector.broadcast %2 : f32 to vector<2x128xf32>
    %4 = arith.mulf %1, %3 : vector<2x128xf32>
    %c1_i32 = arith.constant 1 : i32
    %c7_i32 = arith.constant 7 : i32
    %5 = arith.addi %c1_i32, %c7_i32 : i32
    %c1_i32_4 = arith.constant 1 : i32
    %6 = scf.for %arg6 = %c1_i32 to %5 step %c1_i32_4 iter_args(%arg7 = %4) -> (vector<2x128xf32>)  : i32 {
      %c0_10 = arith.constant 0 : index
      %13 = arith.index_cast %arg6 : i32 to index
      %c0_11 = arith.constant 0 : index
      %c0_12 = arith.constant 0 : index
      %14 = vector.load %arg4[%c0_10, %13, %c0_11, %c0_12] : memref<1x8x2x128xf32, #tpu.memory_space<vmem>>, vector<1x1x2x128xf32>
      %15 = vector.shape_cast %14 : vector<1x1x2x128xf32> to vector<2x128xf32>
      %16 = arith.index_cast %arg6 : i32 to index
      %17 = memref.load %arg2[%16] : memref<8xf32, #tpu.memory_space<smem>>
      %18 = vector.broadcast %17 : f32 to vector<2x128xf32>
      %19 = arith.mulf %15, %18 : vector<2x128xf32>
      %20 = arith.addf %arg7, %19 : vector<2x128xf32>
      scf.yield %20 : vector<2x128xf32>
    }
    %c7_i32_5 = arith.constant 7 : i32
    %c0_6 = arith.constant 0 : index
    %7 = memref.load %arg3[%c0_6] : memref<1xf32, #tpu.memory_space<smem>>
    %8 = vector.broadcast %7 : f32 to vector<2x128xf32>
    %9 = arith.addf %6, %8 : vector<2x128xf32>
    %c0_7 = arith.constant 0 : index
    %c0_8 = arith.constant 0 : index
    %c0_9 = arith.constant 0 : index
    %10 = vector.load %arg5[%c0_7, %c0_8, %c0_9] : memref<1x2x128xf32, #tpu.memory_space<vmem>>, vector<1x2x128xf32>
    %11 = vector.shape_cast %10 : vector<1x2x128xf32> to vector<2x128xf32>
    %12 = vector.shape_cast %9 : vector<2x128xf32> to vector<1x2x128xf32>
    tpu.vector_store %arg5[%c0_7, %c0_8, %c0_9], %12 {strides = array<i32>} : memref<1x2x128xf32, #tpu.memory_space<vmem>>, vector<1x2x128xf32>,
    return
  }
  func.func @transform_0(%arg0: i32, %arg1: i32) -> i32 {
    %c0_i32 = arith.constant 0 : i32
    %c0_i32_0 = arith.constant 0 : i32
    return %c0_i32 : i32
  }
  func.func @transform_1(%arg0: i32, %arg1: i32) -> i32 {
    %c0_i32 = arith.constant 0 : i32
    %c0_i32_0 = arith.constant 0 : i32
    return %c0_i32 : i32
  }
  func.func @transform_2(%arg0: i32, %arg1: i32) -> (i32, i32, i32, i32) {
    %c0_i32 = arith.constant 0 : i32
    %c0_i32_0 = arith.constant 0 : i32
    %c0_i32_1 = arith.constant 0 : i32
    return %arg0, %c0_i32, %arg1, %c0_i32_0 : i32, i32, i32, i32
  }
  func.func @transform_3(%arg0: i32, %arg1: i32) -> (i32, i32, i32) {
    %c0_i32 = arith.constant 0 : i32
    %c0_i32_0 = arith.constant 0 : i32
    return %arg0, %arg1, %c0_i32 : i32, i32, i32
  }
}

</mosaic_0001>

<llo_original>
// kernel: tpu_custom_call.1
$region0: #{tpu_custom_call.1}
  #allocation0 [shape = 'u32[]', space=smem, size = 0x4, offset = 0x4, fixed_abs, tag = 'smem constant byte address 0x4 - core index']
  #allocation1 [shape = 'u32[72,128]{1,0:T(1,128)}', space=vmem, size = 0x9000, scoped, tag = 'internal scratch']
  #allocation2 [shape = 'f32[1]{0:T(128)S(6)}', space=smem, size = 0x200, scoped, tag = 'scoped memory for tpu_custom_call.1']
  %s0 = inlined_call_operand.vmem [shape: f32[8], index: 0, kind: input, shape index: {}]
  %s1 = inlined_call_operand.<no memory space> [shape: f32[1], index: 1, kind: input, shape index: {}]
  %s2 = inlined_call_operand.hbm [shape: f32[2,8,2,128], index: 2, kind: input, shape index: {}]
  %s3 = inlined_call_operand.hbm [shape: f32[2,2,128], index: 3, kind: output, shape index: {}]
  %s4 = sld [smem:[#allocation0]]
  $region60: #{tpu_custom_call.1} parent=0
    _
  %s6 = ssub.s32 1, %s4
  %s7 = scalar_select 0, %s6, %s4
  %8 = sst [smem:[#allocation2]] %s1
  $region1: #{tpu_custom_call.1} parent=0
    #allocation3 [shape = 'u8[512]{0}', space=smem, size = 0x200, scoped, tag = 'input window, operand 0, single buffered']
    #allocation4 [shape = 's32[2]{0}', space=sflag, size = 0x8, scoped, tag = 'scoped memory for tpu_custom_call.1']
    #allocation5 [shape = 's32[2]{0}', space=sflag, size = 0x8, scoped, tag = 'scoped memory for tpu_custom_call.1']
    #allocation6 [shape = 's32[2]{0}', space=sflag, size = 0x8, scoped, tag = 'scoped memory for tpu_custom_call.1']
    #allocation7 [shape = 'u8[16384]{0}', space=vmem, size = 0x4000, scoped, tag = 'input window, operand 2']
    #allocation8 [shape = 'u8[2048]{0}', space=vmem, size = 0x800, scoped, tag = 'output window, operand 0']
    %9 = vsyncpa [#allocation6], 0
    %10 = vsyncpa [#allocation4], 0
    %s11 = scalar_lea.sflag [#allocation4], 1
    %12 = vsyncpa %s11, 0
    %13 = vsyncpa [#allocation5], 0
    %s14 = scalar_lea.sflag [#allocation5], 1
    %15 = vsyncpa %s14, 0
    loop: start=0, step=1, limit=4
    $region2: #{tpu_custom_call.1} parent=1 // loop_pre_header
      _
    $region3: #{tpu_custom_call.1} parent=1 // loop_header
      %s17 = sphi 0, %s21
      %p18 = scmp.ge.s32.totalorder %s17, 4
      %s24 = sphi 0, %s36
      %s25 = sphi 0, %s32
      %s26 = sphi 0, %s24
      %s27 = sphi 0, %s25
      %s28 = sphi 0, %s26
      %s29 = sphi 0, %s27
      %s37 = sphi 0, %s37
      %s39 = sphi 0, %s37
      %s40 = sphi 0, %s39
      %s54 = sphi 0, %s40
      %s58 = sphi 0, %s58
      %s60 = sphi 0, %s58
      %s61 = sphi 0, %s60
      %s75 = sphi 0, %s61
      %s83 = sphi 0, %s85
      %s86 = sphi 0, %s83
      %s87 = sphi 0, %s86
      %s103 = sphi 0, %s87
      %s111 = sphi 0, %s113
      %s114 = sphi 0, %s111
      %s115 = sphi 0, %s114
      %s131 = sphi 0, %s115
    $region4: #{tpu_custom_call.1} parent=1 // loop_header_branch
      %20 = sbr.rel (%p18) target = $region8
    $region5: #{tpu_custom_call.1} parent=1 // loop_body
      %s22 = ssub.s32 %s17, 1
      %s23 = ssub.s32 %s17, 2
      %s30 = sadd.s32 1, %s25
      %p31 = scmp.ge.s32.totalorder %s30, 1
      %s32 = scalar_select %p31, 0, %s30
      %s33 = sadd.s32 1, %s24
      %s34 = scalar_select %p31, %s33, %s24
      %p35 = scmp.ge.s32.totalorder %s34, 2
      %s36 = scalar_select %p35, 0, %s34
      %s38 = sadd.s32 %s37, 1
      %p41 = scmp.eq.s32.totalorder %s17, 1
      %p42 = scmp.ne.s32.totalorder %s37, %s39
      %p43 = scmp.eq.s32.totalorder %s17, 0
      %p44 = por %p42, %p43
      %p45 = scmp.ne.s32.totalorder %s37, %s39
      %p46 = scmp.eq.s32.totalorder %s22, 1
      %p47 = por %p45, %p46
      %p48 = scmp.ne.s32.totalorder %s39, %s40
      %p49 = scmp.eq.s32.totalorder %s22, 0
      %p50 = por %p48, %p49
      %p51 = scmp.ne.s32.totalorder %s39, %s40
      %p52 = scmp.eq.s32.totalorder %s23, 1
      %p53 = por %p51, %p52
      %p55 = scmp.ne.s32.totalorder %s40, %s54
      %p56 = scmp.eq.s32.totalorder %s23, 0
      %p57 = por %p55, %p56
      %s59 = sadd.s32 %s58, 1
      %p62 = scmp.eq.s32.totalorder %s17, 1
      %p63 = scmp.ne.s32.totalorder %s58, %s60
      %p64 = scmp.eq.s32.totalorder %s17, 0
      %p65 = por %p63, %p64
      %p66 = scmp.ne.s32.totalorder %s58, %s60
      %p67 = scmp.eq.s32.totalorder %s22, 1
      %p68 = por %p66, %p67
      %p69 = scmp.ne.s32.totalorder %s60, %s61
      %p70 = scmp.eq.s32.totalorder %s22, 0
      %p71 = por %p69, %p70
      %p72 = scmp.ne.s32.totalorder %s60, %s61
      %p73 = scmp.eq.s32.totalorder %s23, 1
      %p74 = por %p72, %p73
      %p76 = scmp.ne.s32.totalorder %s61, %s75
      %p77 = scmp.eq.s32.totalorder %s23, 0
      %p78 = por %p76, %p77
      %s79 = ssub.s32 %s24, %s36
      %s80 = ssub.s32 %s25, %s32
      %s81 = sor.u32 %s79, %s80
      %p82 = scmp.eq.s32.totalorder %s81, 0
      %s84 = sadd.s32 %s83, 1
      %s85 = scalar_select %p82, %s83, %s84
      %p88 = pneg %p82
      %p89 = scmp.eq.s32.totalorder %s17, 1
      %p90 = por %p88, %p89
      %p91 = scmp.ne.s32.totalorder %s83, %s86
      %p92 = scmp.eq.s32.totalorder %s17, 0
      %p93 = por %p91, %p92
      %p94 = scmp.ne.s32.totalorder %s83, %s86
      %p95 = scmp.eq.s32.totalorder %s22, 1
      %p96 = por %p94, %p95
      %p97 = scmp.ne.s32.totalorder %s86, %s87
      %p98 = scmp.eq.s32.totalorder %s22, 0
      %p99 = por %p97, %p98
      %p100 = scmp.ne.s32.totalorder %s86, %s87
      %p101 = scmp.eq.s32.totalorder %s23, 1
      %p102 = por %p100, %p101
      %p104 = scmp.ne.s32.totalorder %s87, %s103
      %p105 = scmp.eq.s32.totalorder %s23, 0
      %p106 = por %p104, %p105
      %s107 = ssub.s32 %s24, %s36
      %s108 = ssub.s32 %s25, %s32
      %s109 = sor.u32 %s107, %s108
      %p110 = scmp.eq.s32.totalorder %s109, 0
      %s112 = sadd.s32 %s111, 1
      %s113 = scalar_select %p110, %s111, %s112
      %p116 = pneg %p110
      %p117 = scmp.eq.s32.totalorder %s17, 1
      %p118 = por %p116, %p117
      %p119 = scmp.ne.s32.totalorder %s111, %s114
      %p120 = scmp.eq.s32.totalorder %s17, 0
      %p121 = por %p119, %p120
      %p122 = scmp.ne.s32.totalorder %s111, %s114
      %p123 = scmp.eq.s32.totalorder %s22, 1
      %p124 = por %p122, %p123
      %p125 = scmp.ne.s32.totalorder %s114, %s115
      %p126 = scmp.eq.s32.totalorder %s22, 0
      %p127 = por %p125, %p126
      %p128 = scmp.ne.s32.totalorder %s114, %s115
      %p129 = scmp.eq.s32.totalorder %s23, 1
      %p130 = por %p128, %p129
      %p132 = scmp.ne.s32.totalorder %s115, %s131
      %p133 = scmp.eq.s32.totalorder %s23, 0
      %p134 = por %p132, %p133
      %p135 = scmp.le.s32.totalorder 1, %s17
      %p136 = scmp.lt.s32.totalorder %s17, 3
      %p137 = pnand %p135, %p136
      %p138 = pneg %p137
      // Predicated region
      $region9: #{tpu_custom_call.1} parent=5 // pred_check
        _
      $region10: #{tpu_custom_call.1} parent=5 // pred_check_branch
        %140 = sbr.rel (%p137) target = $region12
      $region11: #{tpu_custom_call.1} parent=5 // pred_region
        %s141 = ssub.s32 %s17, 1
        // Predicated region
        $region13: #{tpu_custom_call.1} parent=11 // pred_check
          %p142 = pneg %p50
        $region14: #{tpu_custom_call.1} parent=11 // pred_check_branch
          %144 = sbr.rel (%p142) target = $region16
        $region15: #{tpu_custom_call.1} parent=11 // pred_region
          %146 = vsyncadd [#allocation6], 0
          %s148 = sshll.u32 %s0, 4
          %s149 = int_to_ptr.vmem [resolvable:$true] %s148
          %151 = dma.vmem_to_smem %s149, 16, [#allocation3], [#allocation6]
        $region16: #{tpu_custom_call.1} parent=11 // pred_fallthru
          _
        // Predicated region
        $region17: #{tpu_custom_call.1} parent=11 // pred_check
          %p152 = pneg %p71
        $region18: #{tpu_custom_call.1} parent=11 // pred_check_branch
          %154 = sbr.rel (%p152) target = $region20
        $region19: #{tpu_custom_call.1} parent=11 // pred_region
          _
        $region20: #{tpu_custom_call.1} parent=11 // pred_fallthru
          _
      $region12: #{tpu_custom_call.1} parent=5 // pred_fallthru
        _
      %p155 = scmp.lt.s32.totalorder %s17, 2
      // Predicated region
      $region21: #{tpu_custom_call.1} parent=5 // pred_check
        %p156 = pneg %p155
      $region22: #{tpu_custom_call.1} parent=5 // pred_check_branch
        %158 = sbr.rel (%p156) target = $region24
      $region23: #{tpu_custom_call.1} parent=5 // pred_region
        // Predicated region
        $region25: #{tpu_custom_call.1} parent=23 // pred_check
          %p159 = pneg %p93
        $region26: #{tpu_custom_call.1} parent=23 // pred_check_branch
          %161 = sbr.rel (%p159) target = $region28
        $region27: #{tpu_custom_call.1} parent=23 // pred_region
          %s162 = sand.u32 %s83, 1
          %s163 = scalar_lea.sflag [#allocation4], %s162
          %s164 = sand.u32 %s83, 1
          %s165 = smul.addr %s164, 16
          %s166 = scalar_lea.vmem [#allocation7], %s165
          %168 = vsyncadd %s163, 0
          %s169 = smul.addr %s24, 8
          %s170 = sadd.s32 %s25, %s169
          %s171 = smul.addr %s170, 2
          %s172 = scalar_lea.hbm %s2, %s171
          %s173 = sshll.u32 %s172, 4
          %s174 = int_to_ptr.hbm [resolvable:$true] %s173
          %s175 = sshll.u32 %s166, 4
          %s176 = int_to_ptr.vmem [resolvable:$true] %s175
          %181 = dma.hbm_to_vmem [thread:$0]  %s174, 256, %s176, %s163, 32, 32, 2
        $region28: #{tpu_custom_call.1} parent=23 // pred_fallthru
          _
      $region24: #{tpu_custom_call.1} parent=5 // pred_fallthru
        _
      %p182 = scmp.le.s32.totalorder 1, %s17
      %p183 = scmp.lt.s32.totalorder %s17, 3
      %p184 = pnand %p182, %p183
      %p185 = pneg %p184
      // Predicated region
      $region29: #{tpu_custom_call.1} parent=5 // pred_check
        _
      $region30: #{tpu_custom_call.1} parent=5 // pred_check_branch
        %187 = sbr.rel (%p184) target = $region32
      $region31: #{tpu_custom_call.1} parent=5 // pred_region
        %s188 = ssub.s32 %s17, 1
        // Predicated region
        $region33: #{tpu_custom_call.1} parent=31 // pred_check
          %p189 = pneg %p50
        $region34: #{tpu_custom_call.1} parent=31 // pred_check_branch
          %191 = sbr.rel (%p189) target = $region36
        $region35: #{tpu_custom_call.1} parent=31 // pred_region
          %193 = dma.done [#allocation6], 16
        $region36: #{tpu_custom_call.1} parent=31 // pred_fallthru
          _
        %s194 = sand.u32 %s86, 1
        %s195 = scalar_lea.sflag [#allocation4], %s194
        %s196 = sand.u32 %s86, 1
        %s197 = smul.addr %s196, 16
        %s198 = scalar_lea.vmem [#allocation7], %s197
        // Predicated region
        $region37: #{tpu_custom_call.1} parent=31 // pred_check
          %p199 = pneg %p99
        $region38: #{tpu_custom_call.1} parent=31 // pred_check_branch
          %201 = sbr.rel (%p199) target = $region40
        $region39: #{tpu_custom_call.1} parent=31 // pred_region
          %203 = dma.done %s195, 256
        $region40: #{tpu_custom_call.1} parent=31 // pred_fallthru
          _
        %204 = sfence
        %p205 = pneg %p50
        %p206 = pneg %p47
        %p207 = pneg %p71
        %p208 = pneg %p68
        %s209 = sand.u32 %s86, 1
        %s210 = scalar_lea.sflag [#allocation4], %s209
        %s211 = sand.u32 %s86, 1
        %s212 = smul.addr %s211, 16
        %s213 = scalar_lea.vmem [#allocation7], %s212
        %p214 = pneg %p99
        %p215 = pneg %p96
        %p216 = pneg %p127
        %p217 = pneg %p124
        %s218 = sand.u32 %s114, 1
        %s219 = scalar_lea.sflag [#allocation5], %s218
        %s220 = sand.u32 %s114, 1
        %s221 = smul.addr %s220, 2
        %s222 = scalar_lea.vmem [#allocation8], %s221
        %v223 = vld [vmem:[%s198] sm:$0x3]
        %s224 = sld [smem:[#allocation3]]
        %v225 = vstv %s224
        %v226 = vmul.f32 %v223, %v225
        loop: start=1, step=1, limit=8
        $region41: #{tpu_custom_call.1} parent=31 // loop_pre_header
          _
        $region42: #{tpu_custom_call.1} parent=31 // loop_header
          %s228 = sphi 1, %s232
          %p229 = scmp.ge.s32.totalorder %s228, 8
          %v233 = vphi %v226, %v240
        $region43: #{tpu_custom_call.1} parent=31 // loop_header_branch
          %231 = sbr.rel (%p229) target = $region47
        $region44: #{tpu_custom_call.1} parent=31 // loop_body
          %s234 = smul.u32 %s228, 2
          %s235 = scalar_lea.vmem %s198, %s234 [#allocation7]
          %v236 = vld [vmem:[%s235] sm:$0x3]
          %s237 = sld [smem:[#allocation3 + %s228]]
          %v238 = vstv %s237
          %v239 = vmul.f32 %v236, %v238
          %v240 = vadd.f32 %v233, %v239
        $region45: #{tpu_custom_call.1} parent=31 // loop_footer
          %s232 = sadd.s32 1, %s228
        $region46: #{tpu_custom_call.1} parent=31 // loop_footer_branch
          %227 = sbr.rel target = $region42
        $region47: #{tpu_custom_call.1} parent=31 // loop_exit
          _
        %s241 = sld [smem:[#allocation2]]
        %v242 = vstv %s241
        %v243 = vadd.f32 %v233, %v242
        %244 = vst [vmem:[%s222] sm:$0x3] %v243
        %s245 = sand.u32 %s114, 1
        %s246 = scalar_lea.sflag [#allocation5], %s245
        %s247 = sand.u32 %s114, 1
        %s248 = smul.addr %s247, 2
        %s249 = scalar_lea.vmem [#allocation8], %s248
        // Predicated region
        $region48: #{tpu_custom_call.1} parent=31 // pred_check
          %p250 = pneg %p124
        $region49: #{tpu_custom_call.1} parent=31 // pred_check_branch
          %252 = sbr.rel (%p250) target = $region51
        $region50: #{tpu_custom_call.1} parent=31 // pred_region
          %254 = vsyncadd %s246, 0
          %s255 = sadd.s32 %s27, %s26
          %s256 = smul.addr %s255, 2
          %s257 = scalar_lea.hbm %s3, %s256
          %s259 = sshll.u32 %s249, 4
          %s260 = int_to_ptr.vmem [resolvable:$true] %s259
          %s261 = sshll.u32 %s257, 4
          %s262 = int_to_ptr.hbm [resolvable:$true] %s261
          %264 = dma.vmem_to_hbm [thread:$0]  %s260, 32, %s262, %s246
        $region51: #{tpu_custom_call.1} parent=31 // pred_fallthru
          _
      $region32: #{tpu_custom_call.1} parent=5 // pred_fallthru
        _
      %p265 = scmp.le.s32.totalorder 2, %s17
      // Predicated region
      $region52: #{tpu_custom_call.1} parent=5 // pred_check
        %p266 = pneg %p265
      $region53: #{tpu_custom_call.1} parent=5 // pred_check_branch
        %268 = sbr.rel (%p266) target = $region55
      $region54: #{tpu_custom_call.1} parent=5 // pred_region
        %s269 = ssub.s32 %s17, 2
        // Predicated region
        $region56: #{tpu_custom_call.1} parent=54 // pred_check
          %p270 = pneg %p130
        $region57: #{tpu_custom_call.1} parent=54 // pred_check_branch
          %272 = sbr.rel (%p270) target = $region59
        $region58: #{tpu_custom_call.1} parent=54 // pred_region
          %s273 = sand.u32 %s115, 1
          %s274 = scalar_lea.sflag [#allocation5], %s273
          %s275 = sand.u32 %s115, 1
          %s276 = smul.addr %s275, 2
          %s277 = scalar_lea.vmem [#allocation8], %s276
          %279 = dma.done %s274, 32
        $region59: #{tpu_custom_call.1} parent=54 // pred_fallthru
          _
      $region55: #{tpu_custom_call.1} parent=5 // pred_fallthru
        _
    $region6: #{tpu_custom_call.1} parent=1 // loop_footer
      %s21 = sadd.s32 1, %s17
    $region7: #{tpu_custom_call.1} parent=1 // loop_footer_branch
      %16 = sbr.rel target = $region3
    $region8: #{tpu_custom_call.1} parent=1 // loop_exit
      _
    %280 = vsyncpa [#allocation4], 1
    %s281 = scalar_lea.sflag [#allocation4], 1
    %282 = vsyncpa %s281, 1
    %283 = vsyncpa [#allocation5], 1
    %s284 = scalar_lea.sflag [#allocation5], 1
    %285 = vsyncpa %s284, 1
    %286 = vsyncpa [#allocation6], 1
    %s287 = scalar_lea.sflag [#allocation6], 1
    %288 = vsyncpa %s287, 1

</llo_original>
